<compile_context>
chip_gen: v7x
topology: tpu7x:2x2x1
jax: 0.10.0
libtpu: 0.0.40
codegen_flags: <defaults>
</compile_context>

<pallas_src>
import functools

import numpy as np
import jax
import jax.numpy as jnp
from jax.experimental import pallas as pl
from jax.experimental.pallas import tpu as pltpu


def _round_up(x, m):
    return ((x + m - 1) // m) * m


def _cdiv(a, b):
    return (a + b - 1) // b


def _matcher_cost_kernel(cost_class, use_mask, *refs):
    if use_mask:
        logits_ref, mask_ref, onehot_ref, cost_ref = refs
    else:
        logits_ref, onehot_ref, cost_ref = refs

    # Numerically stable softmax in f32 over the true (unpadded) class dim.
    logits = logits_ref[...].astype(jnp.float32)            # (tile_q, C)
    m = jnp.max(logits, axis=-1, keepdims=True)
    e = jnp.exp(logits - m)
    prob = e * pl.reciprocal(jnp.sum(e, axis=-1, keepdims=True), approx=True)

    # Gather this batch's target-class probabilities via one-hot MXU matmul
    # (bf16 operands, f32 accumulation).
    gathered = jnp.dot(prob.astype(jnp.bfloat16), onehot_ref[...],
                       preferred_element_type=jnp.float32)   # (tile_q, T_pad)

    # Fuse agent-mask (row zeroing commutes with the right matmul) and the
    # (-cost_class) scale into a single f32 multiply on the output tile.
    if use_mask:
        cost_ref[...] = ((mask_ref[...] * (-cost_class)) * gathered
                         ).astype(cost_ref.dtype)
    else:
        cost_ref[...] = ((-cost_class) * gathered).astype(cost_ref.dtype)


def matcher_cost_pallas(pred_logits, agent_mask, tgt_ids_padded, *,
                        cost_class=1.0, use_background=False,
                        tile_q_max=1024, out_dtype=jnp.float32):
    """Per-batch (block-diagonal) matching costs.

    Args:
      pred_logits: [bs, num_queries, num_classes], any float dtype (kept
        native; upcast to f32 happens inside the kernel).
      agent_mask:  [bs, num_queries] bool/float; ignored if use_background.
      tgt_ids_padded: int32 [bs, T] with -1 marking padded target slots.

    Returns:
      C: [bs, num_queries, T_pad] (T_pad = T rounded up to 128).  Column t of
      batch b is valid iff tgt_ids_padded[b, t] >= 0; padded columns are 0.
    """
    bs, num_queries, num_classes = pred_logits.shape
    T_in = int(tgt_ids_padded.shape[1])
    T_pad = _round_up(max(T_in, 1), 128)        # lane-dense output stores
    if T_pad != T_in:
        tgt_ids_padded = jnp.pad(tgt_ids_padded, ((0, 0), (0, T_pad - T_in)),
                                 constant_values=-1)

    # Query-dim tiling. Block == full dim is legal for any num_queries;
    # otherwise tiles are multiples of 8 and the edge block is masked by
    # Pallas (grid = cdiv).  Keep >= 2 parallel grid steps when bs == 1 so
    # both v7x TensorCores get work.
    if num_queries <= tile_q_max:
        tile_q = num_queries
        if bs == 1 and num_queries >= 16:
            tile_q = _round_up(_cdiv(num_queries, 2), 8)
    else:
        tile_q = tile_q_max
        if bs == 1:
            tile_q = min(tile_q, _round_up(_cdiv(num_queries, 2), 8))
    grid_q = _cdiv(num_queries, tile_q)

    # Per-batch one-hot gather matrix [bs, C, T_pad] (bf16):
    # onehot[b, c, t] = (tgt_ids_padded[b, t] == c); padded slots (-1) give
    # all-zero columns.  Tiny; stays VMEM-resident across a batch's q tiles.
    cls_iota = jax.lax.broadcasted_iota(jnp.int32, (1, num_classes, 1), 1)
    onehot = (tgt_ids_padded[:, None, :].astype(jnp.int32) == cls_iota
              ).astype(jnp.bfloat16)

    use_mask = not use_background
    inputs = [pred_logits]
    in_specs = [pl.BlockSpec((None, tile_q, num_classes),
                             lambda b, q: (b, q, 0))]
    if use_mask:
        mask3d = agent_mask.reshape(bs, num_queries, 1).astype(jnp.float32)
        inputs.append(mask3d)
        in_specs.append(pl.BlockSpec((None, tile_q, 1), lambda b, q: (b, q, 0)))
    inputs.append(onehot)
    in_specs.append(pl.BlockSpec((None, num_classes, T_pad),
                                 lambda b, q: (b, 0, 0)))

    kernel = functools.partial(_matcher_cost_kernel, float(cost_class), use_mask)

    return pl.pallas_call(
        kernel,
        out_shape=jax.ShapeDtypeStruct((bs, num_queries, T_pad), out_dtype),
        grid_spec=pltpu.PrefetchScalarGridSpec(
            num_scalar_prefetch=0,
            grid=(bs, grid_q),
            in_specs=in_specs,
            out_specs=pl.BlockSpec((None, tile_q, T_pad),
                                   lambda b, q: (b, q, 0)),
        ),
        compiler_params=pltpu.CompilerParams(
            dimension_semantics=("parallel", "parallel")),
    )(*inputs)


def pad_target_labels(targets, bs):
    """Build int32 [bs, T_pad(-1 padded)] target-label matrix + sizes list."""
    sizes = [int(np.asarray(t["labels"]).shape[0]) for t in targets]
    T_max = max(sizes) if sizes else 0
    T_pad = _round_up(max(T_max, 1), 128)
    tgt = np.full((bs, T_pad), -1, np.int32)
    for b, t in enumerate(targets):
        if sizes[b] > 0:
            tgt[b, :sizes[b]] = np.asarray(t["labels"], dtype=np.int64)
    return jnp.asarray(tgt), sizes


def _linear_sum_assignment(cost):
    """O(n^3) Hungarian / Jonker–Volgenant (shortest augmenting path) solver.

    Matches scipy.optimize.linear_sum_assignment semantics:
    returns (row_ind, col_ind) with len = min(n_rows, n_cols), sorted by row.
    """
    cost = np.asarray(cost, dtype=np.float64)
    transposed = False
    if cost.shape[0] > cost.shape[1]:
        cost = cost.T
        transposed = True
    n, m = cost.shape  # n <= m
    if n == 0:
        e = np.empty(0, np.int64)
        return e, e.copy()

    INF = float("inf")
    u = [0.0] * (n + 1)
    v = [0.0] * (m + 1)
    p = [0] * (m + 1)      # p[j]: row (1-indexed) assigned to column j
    way = [0] * (m + 1)

    for i in range(1, n + 1):
        p[0] = i
        j0 = 0
        minv = [INF] * (m + 1)
        used = [False] * (m + 1)
        while True:
            used[j0] = True
            i0 = p[j0]
            delta = INF
            j1 = 0
            for j in range(1, m + 1):
                if not used[j]:
                    cur = cost[i0 - 1, j - 1] - u[i0] - v[j]
                    if cur < minv[j]:
                        minv[j] = cur
                        way[j] = j0
                    if minv[j] < delta:
                        delta = minv[j]
                        j1 = j
            for j in range(m + 1):
                if used[j]:
                    u[p[j]] += delta
                    v[j] -= delta
                else:
                    minv[j] -= delta
            j0 = j1
            if p[j0] == 0:
                break
        while True:
            j1 = way[j0]
            p[j0] = p[j1]
            j0 = j1
            if j0 == 0:
                break

    row_for = {}
    for j in range(1, m + 1):
        if p[j] != 0:
            row_for[p[j] - 1] = j - 1

    rows = np.array(sorted(row_for.keys()), dtype=np.int64)
    cols = np.array([row_for[r] for r in rows], dtype=np.int64)
    if transposed:
        rows2, cols2 = cols, rows
        order = np.argsort(rows2, kind="stable")
        return rows2[order].astype(np.int64), cols2[order].astype(np.int64)
    return rows, cols


class HungarianMatcherPallas:
    def __init__(self, cost_class: float = 1.0):
        assert cost_class != 0, "all costs cant be 0"
        self.cost_class = cost_class

    def __call__(self, outputs, targets, agent_mask, use_background):
        pred_logits = outputs["pred_logits"]
        bs, num_queries = pred_logits.shape[:2]
        tgt_padded, sizes = pad_target_labels(targets, bs)
        if sum(sizes) == 0:
            empty = np.empty(0, np.int64)
            return [(empty.copy(), empty.copy()) for _ in range(bs)]

        C = matcher_cost_pallas(
            pred_logits, agent_mask, tgt_padded,
            cost_class=self.cost_class, use_background=use_background)
        C = np.asarray(jax.block_until_ready(C))   # (bs, num_queries, T_pad)

        # TODO(synk): linear_sum_assignment is a sequential, data-dependent
        # combinatorial solver with no clean Pallas equivalent; run the O(n^3)
        # Hungarian solver on host on the tiny per-batch cost matrices.
        indices = []
        for b in range(bs):
            if sizes[b] == 0:
                indices.append((np.empty(0, np.int64), np.empty(0, np.int64)))
            else:
                indices.append(_linear_sum_assignment(C[b, :, :sizes[b]]))
        return [(np.asarray(i, dtype=np.int64), np.asarray(j, dtype=np.int64))
                for i, j in indices]


if __name__ == "__main__":
    key = jax.random.PRNGKey(0)
    bs, num_queries, num_classes = 2, 8, 32
    k1, k2, k3, k4 = jax.random.split(key, 4)

    pred_logits = jax.random.normal(k1, (bs, num_queries, num_classes), jnp.float32)
    agent_mask = jax.random.bernoulli(k2, 0.7, (bs, num_queries))

    sizes = [3, 5]
    targets = [
        {"labels": jax.random.randint(k3, (sizes[0],), 0, num_classes, jnp.int32)},
        {"labels": jax.random.randint(k4, (sizes[1],), 0, num_classes, jnp.int32)},
    ]
    tgt_padded, _ = pad_target_labels(targets, bs)

    # Validate the Pallas per-batch cost matrix against a pure-JAX reference
    # (loose tolerance: bf16 MXU operands + approximate reciprocal).
    probs_f32 = jax.nn.softmax(pred_logits.astype(jnp.float32), axis=-1)
    for use_background in (False, True):
        C = matcher_cost_pallas(pred_logits, agent_mask, tgt_padded,
                                cost_class=1.0, use_background=use_background)
        C = np.asarray(jax.block_until_ready(C))
        probs = probs_f32
        if not use_background:
            probs = probs * agent_mask[..., None].astype(jnp.float32)
        probs = np.asarray(probs)
        for b in range(bs):
            labels_b = np.asarray(targets[b]["labels"])
            ref_b = -1.0 * probs[b][:, labels_b]
            np.testing.assert_allclose(C[b, :, :sizes[b]], ref_b,
                                       rtol=2e-2, atol=2e-2)

    # Native-dtype input path (no host upcast): bf16 logits, looser tolerance.
    C_bf16_in = matcher_cost_pallas(pred_logits.astype(jnp.bfloat16), agent_mask,
                                    tgt_padded, cost_class=1.0,
                                    use_background=True)
    C_bf16_in = np.asarray(jax.block_until_ready(C_bf16_in))
    for b in range(bs):
        labels_b = np.asarray(targets[b]["labels"])
        ref_b = -1.0 * np.asarray(probs_f32)[b][:, labels_b]
        np.testing.assert_allclose(C_bf16_in[b, :, :sizes[b]], ref_b,
                                   rtol=5e-2, atol=5e-2)

    # Run both branches of the forward.
    matcher = HungarianMatcherPallas(cost_class=1.0)
    out_no_bg = matcher({"pred_logits": pred_logits}, targets, agent_mask,
                        use_background=False)
    out_bg = matcher({"pred_logits": pred_logits}, targets, agent_mask,
                     use_background=True)

    # Basic sanity: each batch element gets min(num_queries, num_targets) matches.
    for out in (out_no_bg, out_bg):
        for b, (ri, ci) in enumerate(out):
            assert len(ri) == len(ci) == min(num_queries, sizes[b])

    print("KERNEL_OK")
</pallas_src>

<mosaic_0001>
module attributes {stable_mosaic.version = 11 : i64} {
  func.func @_matcher_cost_kernel(%arg0: i32, %arg1: i32, %arg2: memref<1x8x32xf32, #tpu.memory_space<vmem>>, %arg3: memref<1x8x1xf32, #tpu.memory_space<vmem>>, %arg4: memref<1x32x128xbf16, #tpu.memory_space<vmem>>, %arg5: memref<1x8x128xf32, #tpu.memory_space<vmem>>) attributes {dimension_semantics = [#tpu.dimension_semantics<parallel>, #tpu.dimension_semantics<parallel>], iteration_bounds = array<i64: 2, 1>, scalar_prefetch = 0 : i64, scratch_operands = 0 : i64, tpu.core_type = #tpu.core_type<tc>, window_params = [{transform_indices = @transform_0, window_bounds = array<i64: 1, 8, 32>}, {transform_indices = @transform_1, window_bounds = array<i64: 1, 8, 1>}, {transform_indices = @transform_2, window_bounds = array<i64: 1, 32, 128>}, {transform_indices = @transform_3, window_bounds = array<i64: 1, 8, 128>}]} {
    %c0 = arith.constant 0 : index
    %c0_0 = arith.constant 0 : index
    %c0_1 = arith.constant 0 : index
    %0 = vector.load %arg2[%c0, %c0_0, %c0_1] : memref<1x8x32xf32, #tpu.memory_space<vmem>>, vector<1x8x32xf32>
    %1 = vector.shape_cast %0 : vector<1x8x32xf32> to vector<8x32xf32>
    %cst = arith.constant dense<0xFF800000> : vector<8xf32>
    %2 = vector.multi_reduction <maximumf>, %1, %cst [1] : vector<8x32xf32> to vector<8xf32>
    %3 = vector.shape_cast %2 : vector<8xf32> to vector<8x1xf32>
    %4 = vector.broadcast %3 : vector<8x1xf32> to vector<8x32xf32>
    %5 = arith.subf %1, %4 : vector<8x32xf32>
    %6 = math.exp %5 : vector<8x32xf32>
    %cst_2 = arith.constant dense<0.000000e+00> : vector<8xf32>
    %7 = vector.multi_reduction <add>, %6, %cst_2 [1] : vector<8x32xf32> to vector<8xf32>
    %8 = vector.shape_cast %7 : vector<8xf32> to vector<8x1xf32>
    %9 = tpu.reciprocal %8 {approx = true} : vector<8x1xf32> -> vector<8x1xf32>
    %10 = vector.broadcast %9 : vector<8x1xf32> to vector<8x32xf32>
    %11 = arith.mulf %6, %10 : vector<8x32xf32>
    %12 = arith.truncf %11 : vector<8x32xf32> to vector<8x32xbf16>
    %c0_3 = arith.constant 0 : index
    %c0_4 = arith.constant 0 : index
    %c0_5 = arith.constant 0 : index
    %13 = vector.load %arg4[%c0_3, %c0_4, %c0_5] : memref<1x32x128xbf16, #tpu.memory_space<vmem>>, vector<1x32x128xbf16>
    %14 = vector.shape_cast %13 : vector<1x32x128xbf16> to vector<32x128xbf16>
    %cst_6 = arith.constant dense<0.000000e+00> : vector<8x128xf32>
    %15 = tpu.matmul %12, %14, %cst_6 {dimension_numbers = #tpu.dot_dimension_numbers<[1], [0], [0], [1], [0, 0, 1, 1], [], []>} : vector<8x32xbf16>, vector<32x128xbf16>, vector<8x128xf32> -> vector<8x128xf32>
    %c0_7 = arith.constant 0 : index
    %c0_8 = arith.constant 0 : index
    %c0_9 = arith.constant 0 : index
    %16 = vector.load %arg3[%c0_7, %c0_8, %c0_9] : memref<1x8x1xf32, #tpu.memory_space<vmem>>, vector<1x8x1xf32>
    %17 = vector.shape_cast %16 : vector<1x8x1xf32> to vector<8x1xf32>
    %cst_10 = arith.constant -1.000000e+00 : f32
    %18 = vector.broadcast %cst_10 : f32 to vector<8x1xf32>
    %19 = arith.mulf %17, %18 : vector<8x1xf32>
    %20 = vector.broadcast %19 : vector<8x1xf32> to vector<8x128xf32>
    %21 = arith.mulf %20, %15 : vector<8x128xf32>
    %c0_11 = arith.constant 0 : index
    %c0_12 = arith.constant 0 : index
    %c0_13 = arith.constant 0 : index
    %22 = vector.load %arg5[%c0_11, %c0_12, %c0_13] : memref<1x8x128xf32, #tpu.memory_space<vmem>>, vector<1x8x128xf32>
    %23 = vector.shape_cast %22 : vector<1x8x128xf32> to vector<8x128xf32>
    %24 = vector.shape_cast %21 : vector<8x128xf32> to vector<1x8x128xf32>
    tpu.vector_store %arg5[%c0_11, %c0_12, %c0_13], %24 {strides = array<i32>} : memref<1x8x128xf32, #tpu.memory_space<vmem>>, vector<1x8x128xf32>,
    return
  }
  func.func @transform_0(%arg0: i32, %arg1: i32) -> (i32, i32, i32) {
    %c0_i32 = arith.constant 0 : i32
    %c0_i32_0 = arith.constant 0 : i32
    return %arg0, %arg1, %c0_i32 : i32, i32, i32
  }
  func.func @transform_1(%arg0: i32, %arg1: i32) -> (i32, i32, i32) {
    %c0_i32 = arith.constant 0 : i32
    %c0_i32_0 = arith.constant 0 : i32
    return %arg0, %arg1, %c0_i32 : i32, i32, i32
  }
  func.func @transform_2(%arg0: i32, %arg1: i32) -> (i32, i32, i32) {
    %c0_i32 = arith.constant 0 : i32
    %c0_i32_0 = arith.constant 0 : i32
    %c0_i32_1 = arith.constant 0 : i32
    return %arg0, %c0_i32, %c0_i32_0 : i32, i32, i32
  }
  func.func @transform_3(%arg0: i32, %arg1: i32) -> (i32, i32, i32) {
    %c0_i32 = arith.constant 0 : i32
    %c0_i32_0 = arith.constant 0 : i32
    return %arg0, %arg1, %c0_i32 : i32, i32, i32
  }
}

</mosaic_0001>

<llo_original>
// kernel: tpu_custom_call.1
$region0: #{tpu_custom_call.1}
  #allocation0 [shape = 'u32[]', space=smem, size = 0x4, offset = 0x4, fixed_abs, tag = 'smem constant byte address 0x4 - core index']
  #allocation1 [shape = 'u32[144,128]{1,0:T(1,128)}', space=vmem, size = 0x12000, scoped, tag = 'internal scratch']
  %s0 = inlined_call_operand.vmem [shape: f32[2,8,32], index: 0, kind: input, shape index: {}]
  %s1 = inlined_call_operand.vmem [shape: f32[2,8,1], index: 1, kind: input, shape index: {}]
  %s2 = inlined_call_operand.hbm [shape: bf16[2,32,128], index: 2, kind: input, shape index: {}]
  %s3 = inlined_call_operand.hbm [shape: f32[2,8,128], index: 3, kind: output, shape index: {}]
  %s4 = sld [smem:[#allocation0]]
  $region49: #{tpu_custom_call.1} parent=0
    _
  %s6 = ssub.s32 1, %s4
  %s7 = scalar_select 0, %s6, %s4
  $region1: #{tpu_custom_call.1} parent=0
    #allocation2 [shape = 'u8[16384]{0}', space=vmem, size = 0x4000, scoped, tag = 'input window, operand 2']
    #allocation3 [shape = 's32[2]{0}', space=sflag, size = 0x8, scoped, tag = 'scoped memory for tpu_custom_call.1']
    #allocation4 [shape = 's32[2]{0}', space=sflag, size = 0x8, scoped, tag = 'scoped memory for tpu_custom_call.1']
    #allocation5 [shape = 'u8[8192]{0}', space=vmem, size = 0x2000, scoped, tag = 'output window, operand 0']
    %8 = vsyncpa [#allocation3], 0
    %s9 = scalar_lea.sflag [#allocation3], 1
    %10 = vsyncpa %s9, 0
    %11 = vsyncpa [#allocation4], 0
    %s12 = scalar_lea.sflag [#allocation4], 1
    %13 = vsyncpa %s12, 0
    loop: start=0, step=1, limit=4
    $region2: #{tpu_custom_call.1} parent=1 // loop_pre_header
      _
    $region3: #{tpu_custom_call.1} parent=1 // loop_header
      %s15 = sphi 0, %s19
      %p16 = scmp.ge.s32.totalorder %s15, 4
      %s22 = sphi 0, %s34
      %s23 = sphi 0, %s30
      %s24 = sphi 0, %s22
      %s25 = sphi 0, %s23
      %s26 = sphi 0, %s24
      %s27 = sphi 0, %s25
      %s39 = sphi 0, %s41
      %s42 = sphi 0, %s39
      %s43 = sphi 0, %s42
      %s59 = sphi 0, %s43
      %s67 = sphi 0, %s69
      %s70 = sphi 0, %s67
      %s71 = sphi 0, %s70
      %s87 = sphi 0, %s71
      %s93 = sphi 0, %s95
      %s96 = sphi 0, %s93
      %s97 = sphi 0, %s96
      %s113 = sphi 0, %s97
      %s121 = sphi 0, %s123
      %s124 = sphi 0, %s121
      %s125 = sphi 0, %s124
      %s141 = sphi 0, %s125
    $region4: #{tpu_custom_call.1} parent=1 // loop_header_branch
      %18 = sbr.rel (%p16) target = $region8
    $region5: #{tpu_custom_call.1} parent=1 // loop_body
      %s20 = ssub.s32 %s15, 1
      %s21 = ssub.s32 %s15, 2
      %s28 = sadd.s32 1, %s23
      %p29 = scmp.ge.s32.totalorder %s28, 1
      %s30 = scalar_select %p29, 0, %s28
      %s31 = sadd.s32 1, %s22
      %s32 = scalar_select %p29, %s31, %s22
      %p33 = scmp.ge.s32.totalorder %s32, 2
      %s34 = scalar_select %p33, 0, %s32
      %s35 = ssub.s32 %s22, %s34
      %s36 = ssub.s32 %s23, %s30
      %s37 = sor.u32 %s35, %s36
      %p38 = scmp.eq.s32.totalorder %s37, 0
      %s40 = sadd.s32 %s39, 1
      %s41 = scalar_select %p38, %s39, %s40
      %p44 = pneg %p38
      %p45 = scmp.eq.s32.totalorder %s15, 1
      %p46 = por %p44, %p45
      %p47 = scmp.ne.s32.totalorder %s39, %s42
      %p48 = scmp.eq.s32.totalorder %s15, 0
      %p49 = por %p47, %p48
      %p50 = scmp.ne.s32.totalorder %s39, %s42
      %p51 = scmp.eq.s32.totalorder %s20, 1
      %p52 = por %p50, %p51
      %p53 = scmp.ne.s32.totalorder %s42, %s43
      %p54 = scmp.eq.s32.totalorder %s20, 0
      %p55 = por %p53, %p54
      %p56 = scmp.ne.s32.totalorder %s42, %s43
      %p57 = scmp.eq.s32.totalorder %s21, 1
      %p58 = por %p56, %p57
      %p60 = scmp.ne.s32.totalorder %s43, %s59
      %p61 = scmp.eq.s32.totalorder %s21, 0
      %p62 = por %p60, %p61
      %s63 = ssub.s32 %s22, %s34
      %s64 = ssub.s32 %s23, %s30
      %s65 = sor.u32 %s63, %s64
      %p66 = scmp.eq.s32.totalorder %s65, 0
      %s68 = sadd.s32 %s67, 1
      %s69 = scalar_select %p66, %s67, %s68
      %p72 = pneg %p66
      %p73 = scmp.eq.s32.totalorder %s15, 1
      %p74 = por %p72, %p73
      %p75 = scmp.ne.s32.totalorder %s67, %s70
      %p76 = scmp.eq.s32.totalorder %s15, 0
      %p77 = por %p75, %p76
      %p78 = scmp.ne.s32.totalorder %s67, %s70
      %p79 = scmp.eq.s32.totalorder %s20, 1
      %p80 = por %p78, %p79
      %p81 = scmp.ne.s32.totalorder %s70, %s71
      %p82 = scmp.eq.s32.totalorder %s20, 0
      %p83 = por %p81, %p82
      %p84 = scmp.ne.s32.totalorder %s70, %s71
      %p85 = scmp.eq.s32.totalorder %s21, 1
      %p86 = por %p84, %p85
      %p88 = scmp.ne.s32.totalorder %s71, %s87
      %p89 = scmp.eq.s32.totalorder %s21, 0
      %p90 = por %p88, %p89
      %s91 = ssub.s32 %s22, %s34
      %p92 = scmp.eq.s32.totalorder %s91, 0
      %s94 = sadd.s32 %s93, 1
      %s95 = scalar_select %p92, %s93, %s94
      %p98 = pneg %p92
      %p99 = scmp.eq.s32.totalorder %s15, 1
      %p100 = por %p98, %p99
      %p101 = scmp.ne.s32.totalorder %s93, %s96
      %p102 = scmp.eq.s32.totalorder %s15, 0
      %p103 = por %p101, %p102
      %p104 = scmp.ne.s32.totalorder %s93, %s96
      %p105 = scmp.eq.s32.totalorder %s20, 1
      %p106 = por %p104, %p105
      %p107 = scmp.ne.s32.totalorder %s96, %s97
      %p108 = scmp.eq.s32.totalorder %s20, 0
      %p109 = por %p107, %p108
      %p110 = scmp.ne.s32.totalorder %s96, %s97
      %p111 = scmp.eq.s32.totalorder %s21, 1
      %p112 = por %p110, %p111
      %p114 = scmp.ne.s32.totalorder %s97, %s113
      %p115 = scmp.eq.s32.totalorder %s21, 0
      %p116 = por %p114, %p115
      %s117 = ssub.s32 %s22, %s34
      %s118 = ssub.s32 %s23, %s30
      %s119 = sor.u32 %s117, %s118
      %p120 = scmp.eq.s32.totalorder %s119, 0
      %s122 = sadd.s32 %s121, 1
      %s123 = scalar_select %p120, %s121, %s122
      %p126 = pneg %p120
      %p127 = scmp.eq.s32.totalorder %s15, 1
      %p128 = por %p126, %p127
      %p129 = scmp.ne.s32.totalorder %s121, %s124
      %p130 = scmp.eq.s32.totalorder %s15, 0
      %p131 = por %p129, %p130
      %p132 = scmp.ne.s32.totalorder %s121, %s124
      %p133 = scmp.eq.s32.totalorder %s20, 1
      %p134 = por %p132, %p133
      %p135 = scmp.ne.s32.totalorder %s124, %s125
      %p136 = scmp.eq.s32.totalorder %s20, 0
      %p137 = por %p135, %p136
      %p138 = scmp.ne.s32.totalorder %s124, %s125
      %p139 = scmp.eq.s32.totalorder %s21, 1
      %p140 = por %p138, %p139
      %p142 = scmp.ne.s32.totalorder %s125, %s141
      %p143 = scmp.eq.s32.totalorder %s21, 0
      %p144 = por %p142, %p143
      %p145 = scmp.le.s32.totalorder 1, %s15
      %p146 = scmp.lt.s32.totalorder %s15, 3
      %p147 = pnand %p145, %p146
      %p148 = pneg %p147
      // Predicated region
      $region9: #{tpu_custom_call.1} parent=5 // pred_check
        _
      $region10: #{tpu_custom_call.1} parent=5 // pred_check_branch
        %150 = sbr.rel (%p147) target = $region12
      $region11: #{tpu_custom_call.1} parent=5 // pred_region
        %s151 = ssub.s32 %s15, 1
      $region12: #{tpu_custom_call.1} parent=5 // pred_fallthru
        _
      %p152 = scmp.lt.s32.totalorder %s15, 2
      // Predicated region
      $region13: #{tpu_custom_call.1} parent=5 // pred_check
        %p153 = pneg %p152
      $region14: #{tpu_custom_call.1} parent=5 // pred_check_branch
        %155 = sbr.rel (%p153) target = $region16
      $region15: #{tpu_custom_call.1} parent=5 // pred_region
        // Predicated region
        $region17: #{tpu_custom_call.1} parent=15 // pred_check
          %p156 = pneg %p49
        $region18: #{tpu_custom_call.1} parent=15 // pred_check_branch
          %158 = sbr.rel (%p156) target = $region20
        $region19: #{tpu_custom_call.1} parent=15 // pred_region
          %p159 = scmp.lt.s32.totalorder %s22, 1
          %s160 = scalar_select %p159, %s22, 1
          %p161 = scmp.lt.s32.totalorder %s23, 0
          %s162 = scalar_select %p161, %s23, 0
          %s163 = sadd.s32 %s162, %s160
          %s164 = smul.addr %s163, 8
          %s165 = scalar_lea.vmem %s0, %s164
        $region20: #{tpu_custom_call.1} parent=15 // pred_fallthru
          _
        // Predicated region
        $region21: #{tpu_custom_call.1} parent=15 // pred_check
          %p166 = pneg %p77
        $region22: #{tpu_custom_call.1} parent=15 // pred_check_branch
          %168 = sbr.rel (%p166) target = $region24
        $region23: #{tpu_custom_call.1} parent=15 // pred_region
          %p169 = scmp.lt.s32.totalorder %s22, 1
          %s170 = scalar_select %p169, %s22, 1
          %p171 = scmp.lt.s32.totalorder %s23, 0
          %s172 = scalar_select %p171, %s23, 0
          %s173 = sadd.s32 %s172, %s170
          %s174 = smul.addr %s173, 8
          %s175 = scalar_lea.vmem %s1, %s174
        $region24: #{tpu_custom_call.1} parent=15 // pred_fallthru
          _
        // Predicated region
        $region25: #{tpu_custom_call.1} parent=15 // pred_check
          %p176 = pneg %p103
        $region26: #{tpu_custom_call.1} parent=15 // pred_check_branch
          %178 = sbr.rel (%p176) target = $region28
        $region27: #{tpu_custom_call.1} parent=15 // pred_region
          %s179 = sand.u32 %s93, 1
          %s180 = scalar_lea.sflag [#allocation3], %s179
          %s181 = sand.u32 %s93, 1
          %s182 = smul.addr %s181, 16
          %s183 = scalar_lea.vmem [#allocation2], %s182
          %s185 = ssub.s32 256, 256
          %186 = vsyncadd %s180, %s185
          %s187 = smul.addr %s22, 4
          %s188 = smul.addr %s187, 64
          %s189 = scalar_lea.hbm %s2, %s188
          %s190 = sshll.u32 %s183, 4
          %s191 = int_to_ptr.vmem [resolvable:$true] %s190
          %196 = dma.hbm_to_vmem [thread:$0]  %s189, 256, %s191, %s180, 64, 64, 4
        $region28: #{tpu_custom_call.1} parent=15 // pred_fallthru
          _
      $region16: #{tpu_custom_call.1} parent=5 // pred_fallthru
        _
      %p197 = scmp.le.s32.totalorder 1, %s15
      %p198 = scmp.lt.s32.totalorder %s15, 3
      %p199 = pnand %p197, %p198
      %p200 = pneg %p199
      // Predicated region
      $region29: #{tpu_custom_call.1} parent=5 // pred_check
        _
      $region30: #{tpu_custom_call.1} parent=5 // pred_check_branch
        %202 = sbr.rel (%p199) target = $region32
      $region31: #{tpu_custom_call.1} parent=5 // pred_region
        %s203 = ssub.s32 %s15, 1
        %s204 = sand.u32 %s96, 1
        %s205 = scalar_lea.sflag [#allocation3], %s204
        %s206 = sand.u32 %s96, 1
        %s207 = smul.addr %s206, 16
        %s208 = scalar_lea.vmem [#allocation2], %s207
        // Predicated region
        $region33: #{tpu_custom_call.1} parent=31 // pred_check
          %p209 = pneg %p109
        $region34: #{tpu_custom_call.1} parent=31 // pred_check_branch
          %211 = sbr.rel (%p209) target = $region36
        $region35: #{tpu_custom_call.1} parent=31 // pred_region
          %212 = dma.done %s205, 256
        $region36: #{tpu_custom_call.1} parent=31 // pred_fallthru
          _
        %p213 = scmp.lt.s32.totalorder %s24, 1
        %s214 = scalar_select %p213, %s24, 1
        %p215 = scmp.lt.s32.totalorder %s25, 0
        %s216 = scalar_select %p215, %s25, 0
        %s217 = sadd.s32 %s216, %s214
        %s218 = smul.addr %s217, 8
        %s219 = scalar_lea.vmem %s0, %s218
        %p220 = pneg %p55
        %p221 = pneg %p52
        %p222 = scmp.lt.s32.totalorder %s24, 1
        %s223 = scalar_select %p222, %s24, 1
        %p224 = scmp.lt.s32.totalorder %s25, 0
        %s225 = scalar_select %p224, %s25, 0
        %s226 = sadd.s32 %s225, %s223
        %s227 = smul.addr %s226, 8
        %s228 = scalar_lea.vmem %s1, %s227
        %p229 = pneg %p83
        %p230 = pneg %p80
        %s231 = sand.u32 %s96, 1
        %s232 = scalar_lea.sflag [#allocation3], %s231
        %s233 = sand.u32 %s96, 1
        %s234 = smul.addr %s233, 16
        %s235 = scalar_lea.vmem [#allocation2], %s234
        %p236 = pneg %p109
        %p237 = pneg %p106
        %p238 = pneg %p137
        %p239 = pneg %p134
        %s240 = sand.u32 %s124, 1
        %s241 = scalar_lea.sflag [#allocation4], %s240
        %s242 = sand.u32 %s124, 1
        %s243 = smul.addr %s242, 8
        %s244 = scalar_lea.vmem [#allocation5], %s243
        %p245 = scmp.lt.s32.totalorder %s24, 1
        %s246 = scalar_select %p245, %s24, 1
        %p247 = scmp.lt.s32.totalorder %s25, 0
        %s248 = scalar_select %p247, %s25, 0
        %s249 = sadd.s32 %s248, %s246
        %s250 = smul.addr %s249, 8
        %s251 = scalar_lea.vmem %s0, %s250
        %p252 = scmp.lt.s32.totalorder %s24, 1
        %s253 = scalar_select %p252, %s24, 1
        %p254 = scmp.lt.s32.totalorder %s25, 0
        %s255 = scalar_select %p254, %s25, 0
        %s256 = sadd.s32 %s255, %s253
        %s257 = smul.addr %s256, 8
        %s258 = scalar_lea.vmem %s1, %s257
        %v260 = vld [vmem:[%s251] sm:$0xff]
        %vm261 = vcmask 261120
        %v262 = vsel %vm261, %v260, -inf
        %263 = vmax.xlane.f32.xlu0 %v262
        %v264 = vpop.xlane.xlu0 %263
        %v265 = vsub.f32 %v260, %v264
        %v266 = vmul.f32 %v265, 1.442695
        %v267 = vpow.pop %v266
        %v268 = vsel %vm261, %v267, 0.0
        %269 = vadd.xlane.f32.xlu0 %v268
        %v270 = vpop.xlane.xlu0 %269
        %v271 = vrcp.pop %v270
        %v272 = vmul.f32 %v267, %v271
        %v273 = vpack.c.bf16 %v272, %v272
        %v274 = vld [vmem:[%s208] sm:$0xf]
        %v275 = vld [vmem:[%s208 + $0x4] sm:$0xf]
        %v276 = vld [vmem:[%s208 + $0x8] sm:$0xf]
        %v277 = vld [vmem:[%s208 + $0xc] sm:$0xf]
        %v282 = vunpack.c.l.b16 %v274
        %v283 = vunpack.c.l.b16 %v275
        %v284 = vunpack.c.l.b16 %v276
        %v285 = vunpack.c.l.b16 %v277
        %v286 = vpack.c.b16 %v283, %v282
        %v287 = vpack.c.b16 %v285, %v284
        %v291 = vsel %vm261, %v273, 0
        %293 = vmatprep.subr.bf16.mxu0 0
        %294 = vmatpush1.bf16.msra.mxu0 %v286
        %295 = vmatprep.subr.bf16.mxu0 0
        %296 = vmatpush1.bf16.msra.mxu0 %v287
        %297 = vmatprep.subr.bf16.mxu0 0
        %298 = vmatpush1.bf16.msra.mxu0 0
        %299 = vmatprep.subr.bf16.mxu0 0
        %300 = vmatpush1.bf16.msra.mxu0 0
        %301 = vmatprep.subr.bf16.mxu0 0
        %302 = vmatpush1.bf16.msra.mxu0 0
        %303 = vmatprep.subr.bf16.mxu0 0
        %304 = vmatpush1.bf16.msra.mxu0 0
        %305 = vmatprep.subr.bf16.mxu0 0
        %306 = vmatpush1.bf16.msra.mxu0 0
        %307 = vmatprep.subr.bf16.mxu0 0
        %308 = vmatpush1.bf16.msra.mxu0 0
        %309 = vmatprep.subr.bf16.mxu0 0
        %310 = vmatpush1.bf16.msra.mxu0 0
        %311 = vmatprep.subr.bf16.mxu0 0
        %312 = vmatpush1.bf16.msra.mxu0 0
        %313 = vmatprep.subr.bf16.mxu0 0
        %314 = vmatpush1.bf16.msra.mxu0 0
        %315 = vmatprep.subr.bf16.mxu0 0
        %316 = vmatpush1.bf16.msra.mxu0 0
        %317 = vmatprep.subr.bf16.mxu0 0
        %318 = vmatpush1.bf16.msra.mxu0 0
        %319 = vmatprep.subr.bf16.mxu0 0
        %320 = vmatpush1.bf16.msra.mxu0 0
        %321 = vmatprep.subr.bf16.mxu0 0
        %322 = vmatpush1.bf16.msra.mxu0 0
        %323 = vmatprep.subr.bf16.mxu0 0
        %324 = vmatpush1.bf16.msra.mxu0 0
        %325 = vmatprep.mubr.bf16.mxu0 0
        %326 = vmatmul.mubr.bf16.gmra.mrb[0].mxu0 %v291
        %v327 = vpop.f32.mrb[0].mxu0
        %v328 = vadd.f32 0.0, %v327
        %v329 = vpop.f32.mrb[0].mxu0
        %v330 = vpop.f32.mrb[0].mxu0
        %v331 = vpop.f32.mrb[0].mxu0
        %332 = vdwg.mxu0
        %v333 = vld [vmem:[%s258] sm:$0xff]
        %v334 = vmul.f32 %v333, -1.0
        %336 = vset.pattern.permute.xlu0 0
        %337 = vperm.xlu0 %336, %v334
        %v338 = vpop.permute.xlu0 %337
        %v340 = vmul.f32 %v338, %v328
        %341 = vst [vmem:[%s244] sm:$0xff] %v340
        %s342 = sand.u32 %s124, 1
        %s343 = scalar_lea.sflag [#allocation4], %s342
        %s344 = sand.u32 %s124, 1
        %s345 = smul.addr %s344, 8
        %s346 = scalar_lea.vmem [#allocation5], %s345
        // Predicated region
        $region37: #{tpu_custom_call.1} parent=31 // pred_check
          %p347 = pneg %p134
        $region38: #{tpu_custom_call.1} parent=31 // pred_check_branch
          %349 = sbr.rel (%p347) target = $region40
        $region39: #{tpu_custom_call.1} parent=31 // pred_region
          %s351 = ssub.s32 128, 128
          %352 = vsyncadd %s343, %s351
          %s353 = sadd.s32 %s25, %s24
          %s354 = smul.addr %s353, 128
          %s355 = scalar_lea.hbm %s3, %s354
          %s357 = sshll.u32 %s346, 4
          %s358 = int_to_ptr.vmem [resolvable:$true] %s357
          %360 = dma.vmem_to_hbm [thread:$0]  %s358, 128, %s355, %s343
        $region40: #{tpu_custom_call.1} parent=31 // pred_fallthru
          _
      $region32: #{tpu_custom_call.1} parent=5 // pred_fallthru
        _
      %p361 = scmp.le.s32.totalorder 2, %s15
      // Predicated region
      $region41: #{tpu_custom_call.1} parent=5 // pred_check
        %p362 = pneg %p361
      $region42: #{tpu_custom_call.1} parent=5 // pred_check_branch
        %364 = sbr.rel (%p362) target = $region44
      $region43: #{tpu_custom_call.1} parent=5 // pred_region
        %s365 = ssub.s32 %s15, 2
        // Predicated region
        $region45: #{tpu_custom_call.1} parent=43 // pred_check
          %p366 = pneg %p140
        $region46: #{tpu_custom_call.1} parent=43 // pred_check_branch
          %368 = sbr.rel (%p366) target = $region48
        $region47: #{tpu_custom_call.1} parent=43 // pred_region
          %s369 = sand.u32 %s125, 1
          %s370 = scalar_lea.sflag [#allocation4], %s369
          %s371 = sand.u32 %s125, 1
          %s372 = smul.addr %s371, 8
          %s373 = scalar_lea.vmem [#allocation5], %s372
          %374 = dma.done %s370, 128
        $region48: #{tpu_custom_call.1} parent=43 // pred_fallthru
          _
      $region44: #{tpu_custom_call.1} parent=5 // pred_fallthru
        _
    $region6: #{tpu_custom_call.1} parent=1 // loop_footer
      %s19 = sadd.s32 1, %s15
    $region7: #{tpu_custom_call.1} parent=1 // loop_footer_branch
      %14 = sbr.rel target = $region3
    $region8: #{tpu_custom_call.1} parent=1 // loop_exit
      _
    %375 = vsyncpa [#allocation3], 1
    %s376 = scalar_lea.sflag [#allocation3], 1
    %377 = vsyncpa %s376, 1
    %378 = vsyncpa [#allocation4], 1
    %s379 = scalar_lea.sflag [#allocation4], 1
    %380 = vsyncpa %s379, 1

</llo_original>
